<compile_context>
chip_gen: v5e
topology: v5e:2x2
jax: 0.10.0
libtpu: 0.0.40
codegen_flags: <defaults>
</compile_context>

<pallas_src>
import functools

import jax
import jax.numpy as jnp
from jax.experimental import pallas as pl
from jax.experimental.pallas import tpu as pltpu


def _round_up(x, m):
    return ((x + m - 1) // m) * m


def _decoder_kernel(n_layers, hid_dim, emb_ref, h_in_ref, c_in_ref, *rest):
    """Single-timestep multi-layer LSTM cell + (vocab-tiled) output projection.

    rest = [w_ih_0, w_hh_0, b_0, ..., w_ih_{L-1}, w_hh_{L-1}, b_{L-1},
            w_lin, b_lin, pred_ref, h_out_ref, c_out_ref, x_scratch]

    Layouts (prepared by the wrapper):
      emb_ref  : (bb, E)   bf16   embedded token, batch tile
      h/c in   : (L, bb, H) f32   LSTM state, batch tile
      w_ih_l   : (in_dim, Gp) bf16, w_hh_l: (H, Gp) bf16, b_l: (1, Gp) f32
                 where Gp = round_up(4H, 128); gates contiguous PyTorch order.
      w_lin    : (H, TN) bf16 tile of the head; b_lin: (1, TN) f32 tile
      pred     : (bb, TN) f32 tile; h/c out: (L, bb, H) f32 (resident over vocab)
      x_scratch: (bb, H) bf16 top-layer output, carried across vocab tiles
    """
    H = hid_dim
    w_refs = rest[:3 * n_layers]
    w_lin_ref = rest[3 * n_layers]
    b_lin_ref = rest[3 * n_layers + 1]
    pred_ref, h_out_ref, c_out_ref, x_sc = rest[3 * n_layers + 2:]

    # Run the (cheap) LSTM stack only on the first vocab tile of each batch tile.
    @pl.when(pl.program_id(1) == 0)
    def _lstm():
        x = emb_ref[...]                                  # (bb, E) bf16
        for l in range(n_layers):
            w_ih = w_refs[3 * l][...]                     # (in_dim, Gp) bf16
            w_hh = w_refs[3 * l + 1][...]                 # (H, Gp) bf16
            b = w_refs[3 * l + 2][...]                    # (1, Gp) f32
            h = h_in_ref[l]                               # (bb, H) f32
            c = c_in_ref[l]                               # (bb, H) f32

            gates = (jnp.dot(x, w_ih, preferred_element_type=jnp.float32)
                     + jnp.dot(h.astype(jnp.bfloat16), w_hh,
                               preferred_element_type=jnp.float32)
                     + b)                                 # (bb, Gp) f32

            # PyTorch gate order (i, f, g, o), contiguous H-wide slices.
            i_g = jax.nn.sigmoid(gates[:, 0 * H:1 * H])
            f_g = jax.nn.sigmoid(gates[:, 1 * H:2 * H])
            g_g = jnp.tanh(gates[:, 2 * H:3 * H])
            o_g = jax.nn.sigmoid(gates[:, 3 * H:4 * H])

            c_new = f_g * c + i_g * g_g                   # f32 state math
            h_new = o_g * jnp.tanh(c_new)

            h_out_ref[l] = h_new
            c_out_ref[l] = c_new
            x = h_new.astype(jnp.bfloat16)     # next layer input (eval dropout = id)

        x_sc[...] = x                                     # top-layer output, bf16

    # Head tile: (bb, H) @ (H, TN) per (batch tile, vocab tile).
    pred_ref[...] = (jnp.dot(x_sc[...], w_lin_ref[...],
                             preferred_element_type=jnp.float32)
                     + b_lin_ref[...])


def prepare_decoder_params(raw, *, emb_dim, hid_dim, output_dim, n_layers,
                           weight_dtype=jnp.bfloat16):
    """One-time re-layout of PyTorch-style Decoder weights.

    raw: embedding (V, E), w_ih_l (in_dim, 4H), w_hh_l (H, 4H),
         b_l (1, 4H) = b_ih + b_hh, w_lin (H, V), b_lin (1, V).
    Only the *total* gate width (4H) and the vocab width are padded to 128;
    matmul operand weights are cast to bf16, biases stay f32."""
    H = hid_dim
    Gp = _round_up(4 * H, 128)
    Vp = _round_up(output_dim, 128)

    def pad_cols(w, cols_p, dtype):
        out = jnp.zeros((w.shape[0], cols_p), dtype)
        return out.at[:, :w.shape[1]].set(w.astype(dtype))

    p = {"embedding": raw["embedding"].astype(weight_dtype), "Gp": Gp, "Vp": Vp}
    for l in range(n_layers):
        p[f"w_ih_{l}"] = pad_cols(raw[f"w_ih_{l}"], Gp, weight_dtype)
        p[f"w_hh_{l}"] = pad_cols(raw[f"w_hh_{l}"], Gp, weight_dtype)
        p[f"b_{l}"] = pad_cols(raw[f"b_{l}"], Gp, jnp.float32)
    p["w_lin"] = pad_cols(raw["w_lin"], Vp, weight_dtype)
    p["b_lin"] = pad_cols(raw["b_lin"], Vp, jnp.float32)
    return p


def decoder_forward(token, hidden, cell, params, *, n_layers, hid_dim, output_dim):
    """token: (B,) int32 ids; hidden/cell: (n_layers, B, H) float32.
    Returns (prediction (B, output_dim), hidden, cell), matching Decoder.forward
    in eval mode."""
    B = token.shape[0]
    H = hid_dim
    L = n_layers
    E = params["embedding"].shape[1]
    Vp = params["Vp"]

    # Embedding gather (+ eval-mode dropout = identity) stays as one XLA gather.
    emb = jnp.take(params["embedding"], token, axis=0)          # (B, E) bf16

    # Batch padding / tiling. Bp is a multiple of bb (fixes the >128 tail bug).
    B8 = max(_round_up(B, 8), 8)
    bb = min(B8, 128)
    Bp = _round_up(B8, bb)
    nbt = Bp // bb

    emb_p = jnp.zeros((Bp, E), emb.dtype).at[:B].set(emb)
    h_p = jnp.zeros((L, Bp, H), jnp.float32).at[:, :B].set(hidden.astype(jnp.float32))
    c_p = jnp.zeros((L, Bp, H), jnp.float32).at[:, :B].set(cell.astype(jnp.float32))

    # Vocab head tile width (multiple of 128 dividing Vp).
    TN = 512 if Vp % 512 == 0 else (256 if Vp % 256 == 0 else 128)
    nvt = Vp // TN

    batch2 = lambda bi, vj: (bi, 0)
    state3 = lambda bi, vj: (0, bi, 0)
    const2 = lambda bi, vj: (0, 0)
    head2 = lambda bi, vj: (0, vj)

    ins = [emb_p, h_p, c_p]
    in_specs = [pl.BlockSpec((bb, E), batch2),
                pl.BlockSpec((L, bb, H), state3),
                pl.BlockSpec((L, bb, H), state3)]
    for l in range(L):
        for name in (f"w_ih_{l}", f"w_hh_{l}", f"b_{l}"):
            w = params[name]
            ins.append(w)
            in_specs.append(pl.BlockSpec(w.shape, const2))   # grid-invariant
    ins += [params["w_lin"], params["b_lin"]]
    in_specs += [pl.BlockSpec((H, TN), head2),
                 pl.BlockSpec((1, TN), head2)]

    out_specs = (pl.BlockSpec((bb, TN), lambda bi, vj: (bi, vj)),
                 pl.BlockSpec((L, bb, H), state3),
                 pl.BlockSpec((L, bb, H), state3))
    out_shape = (jax.ShapeDtypeStruct((Bp, Vp), jnp.float32),
                 jax.ShapeDtypeStruct((L, Bp, H), jnp.float32),
                 jax.ShapeDtypeStruct((L, Bp, H), jnp.float32))

    # Explicit VMEM limit derived from the actual (double-buffered) block footprint.
    blk = bb * E * 2 + 2 * L * bb * H * 4                       # emb + h/c in
    for l in range(L):
        blk += 2 * (params[f"w_ih_{l}"].size + params[f"w_hh_{l}"].size)
        blk += 4 * params[f"b_{l}"].size
    blk += H * TN * 2 + TN * 4                                  # w_lin/b_lin tiles
    blk += bb * TN * 4 + 2 * L * bb * H * 4                     # pred + h/c out
    vmem_limit = int(min(max(2 * blk + bb * H * 2 + (2 << 20), 8 << 20), 64 << 20))

    kernel = functools.partial(_decoder_kernel, L, H)
    pred_p, h_out_p, c_out_p = pl.pallas_call(
        kernel,
        grid=(nbt, nvt),
        in_specs=in_specs,
        out_specs=out_specs,
        out_shape=out_shape,
        scratch_shapes=[pltpu.VMEM((bb, H), jnp.bfloat16)],
        compiler_params=pltpu.CompilerParams(
            dimension_semantics=("parallel", "arbitrary"),
            vmem_limit_bytes=vmem_limit),
    )(*ins)

    return pred_p[:B, :output_dim], h_out_p[:, :B, :], c_out_p[:, :B, :]


def decoder_ref(token, hidden, cell, raw, *, n_layers, hid_dim):
    """Pure-JAX f32 reference with PyTorch Decoder.forward semantics (eval mode)."""
    H = hid_dim
    x = jnp.take(raw["embedding"], token, axis=0).astype(jnp.float32)
    hs, cs = [], []
    for l in range(n_layers):
        h = hidden[l].astype(jnp.float32)
        c = cell[l].astype(jnp.float32)
        g = x @ raw[f"w_ih_{l}"] + h @ raw[f"w_hh_{l}"] + raw[f"b_{l}"]
        i_g = jax.nn.sigmoid(g[:, :H])
        f_g = jax.nn.sigmoid(g[:, H:2 * H])
        g_g = jnp.tanh(g[:, 2 * H:3 * H])
        o_g = jax.nn.sigmoid(g[:, 3 * H:])
        c_new = f_g * c + i_g * g_g
        h_new = o_g * jnp.tanh(c_new)
        hs.append(h_new)
        cs.append(c_new)
        x = h_new
    pred = x @ raw["w_lin"] + raw["b_lin"]
    return pred, jnp.stack(hs), jnp.stack(cs)


if __name__ == "__main__":
    output_dim, emb_dim, hid_dim, n_layers = 20, 16, 32, 2
    B = 4

    key = jax.random.PRNGKey(0)
    keys = jax.random.split(key, 1 + 3 * n_layers + 2 + 3)

    raw = {}
    ki = 0
    raw["embedding"] = jax.random.normal(
        keys[ki], (output_dim, emb_dim), jnp.float32) * 0.1; ki += 1
    k = 1.0 / jnp.sqrt(jnp.float32(hid_dim))        # PyTorch LSTM/Linear init range
    for l in range(n_layers):
        in_dim = emb_dim if l == 0 else hid_dim
        raw[f"w_ih_{l}"] = jax.random.uniform(
            keys[ki], (in_dim, 4 * hid_dim), jnp.float32, -k, k); ki += 1
        raw[f"w_hh_{l}"] = jax.random.uniform(
            keys[ki], (hid_dim, 4 * hid_dim), jnp.float32, -k, k); ki += 1
        raw[f"b_{l}"] = jax.random.uniform(
            keys[ki], (1, 4 * hid_dim), jnp.float32, -k, k); ki += 1
    raw["w_lin"] = jax.random.uniform(
        keys[ki], (hid_dim, output_dim), jnp.float32, -k, k); ki += 1
    raw["b_lin"] = jax.random.uniform(
        keys[ki], (1, output_dim), jnp.float32, -k, k); ki += 1

    token = jax.random.randint(keys[ki], (B,), 0, output_dim, dtype=jnp.int32); ki += 1
    hidden0 = jax.random.normal(keys[ki], (n_layers, B, hid_dim), jnp.float32); ki += 1
    cell0 = jax.random.normal(keys[ki], (n_layers, B, hid_dim), jnp.float32); ki += 1

    padded = prepare_decoder_params(raw, emb_dim=emb_dim, hid_dim=hid_dim,
                                    output_dim=output_dim, n_layers=n_layers)

    pred, h_out, c_out = decoder_forward(token, hidden0, cell0, padded,
                                         n_layers=n_layers, hid_dim=hid_dim,
                                         output_dim=output_dim)
    jax.block_until_ready((pred, h_out, c_out))

    pred_ref, h_ref, c_ref = decoder_ref(token, hidden0, cell0, raw,
                                         n_layers=n_layers, hid_dim=hid_dim)

    assert pred.shape == (B, output_dim)
    assert h_out.shape == (n_layers, B, hid_dim)
    assert c_out.shape == (n_layers, B, hid_dim)
    # bf16 matmul operands -> looser tolerance than the f32 reference.
    assert jnp.allclose(pred, pred_ref, atol=2e-2, rtol=2e-2)
    assert jnp.allclose(h_out, h_ref, atol=2e-2, rtol=2e-2)
    assert jnp.allclose(c_out, c_ref, atol=2e-2, rtol=2e-2)
    print("KERNEL_OK")
</pallas_src>

<mosaic_0001>
module attributes {stable_mosaic.version = 11 : i64} {
  func.func @_decoder_kernel(%arg0: i32, %arg1: i32, %arg2: memref<8x16xbf16, #tpu.memory_space<vmem>>, %arg3: memref<2x8x32xf32, #tpu.memory_space<vmem>>, %arg4: memref<2x8x32xf32, #tpu.memory_space<vmem>>, %arg5: memref<16x128xbf16, #tpu.memory_space<vmem>>, %arg6: memref<32x128xbf16, #tpu.memory_space<vmem>>, %arg7: memref<1x128xf32, #tpu.memory_space<vmem>>, %arg8: memref<32x128xbf16, #tpu.memory_space<vmem>>, %arg9: memref<32x128xbf16, #tpu.memory_space<vmem>>, %arg10: memref<1x128xf32, #tpu.memory_space<vmem>>, %arg11: memref<32x128xbf16, #tpu.memory_space<vmem>>, %arg12: memref<1x128xf32, #tpu.memory_space<vmem>>, %arg13: memref<8x128xf32, #tpu.memory_space<vmem>>, %arg14: memref<2x8x32xf32, #tpu.memory_space<vmem>>, %arg15: memref<2x8x32xf32, #tpu.memory_space<vmem>>, %arg16: memref<8x32xbf16, #tpu.memory_space<vmem>>) attributes {dimension_semantics = [#tpu.dimension_semantics<parallel>, #tpu.dimension_semantics<arbitrary>], iteration_bounds = array<i64: 1, 1>, scalar_prefetch = 0 : i64, scratch_operands = 1 : i64, tpu.core_type = #tpu.core_type<tc>, window_params = [{transform_indices = @transform_0, window_bounds = array<i64: 8, 16>}, {transform_indices = @transform_1, window_bounds = array<i64: 2, 8, 32>}, {transform_indices = @transform_2, window_bounds = array<i64: 2, 8, 32>}, {pipeline_mode = #tpu.pipeline_mode<synchronous>, transform_indices = @transform_3, window_bounds = array<i64: 16, 128>}, {pipeline_mode = #tpu.pipeline_mode<synchronous>, transform_indices = @transform_4, window_bounds = array<i64: 32, 128>}, {pipeline_mode = #tpu.pipeline_mode<synchronous>, transform_indices = @transform_5, window_bounds = array<i64: 1, 128>}, {pipeline_mode = #tpu.pipeline_mode<synchronous>, transform_indices = @transform_6, window_bounds = array<i64: 32, 128>}, {pipeline_mode = #tpu.pipeline_mode<synchronous>, transform_indices = @transform_7, window_bounds = array<i64: 32, 128>}, {pipeline_mode = #tpu.pipeline_mode<synchronous>, transform_indices = @transform_8, window_bounds = array<i64: 1, 128>}, {transform_indices = @transform_9, window_bounds = array<i64: 32, 128>}, {transform_indices = @transform_10, window_bounds = array<i64: 1, 128>}, {transform_indices = @transform_11, window_bounds = array<i64: 8, 128>}, {transform_indices = @transform_12, window_bounds = array<i64: 2, 8, 32>}, {transform_indices = @transform_13, window_bounds = array<i64: 2, 8, 32>}]} {
    %c0_i32 = arith.constant 0 : i32
    %0 = arith.cmpi eq, %arg1, %c0_i32 : i32
    %1 = arith.extui %0 : i1 to i32
    %c0_i32_0 = arith.constant 0 : i32
    %2 = arith.cmpi ne, %1, %c0_i32_0 : i32
    scf.if %2 {
      %c0_8 = arith.constant 0 : index
      %c0_9 = arith.constant 0 : index
      %10 = vector.load %arg2[%c0_8, %c0_9] : memref<8x16xbf16, #tpu.memory_space<vmem>>, vector<8x16xbf16>
      %c0_10 = arith.constant 0 : index
      %c0_11 = arith.constant 0 : index
      %11 = vector.load %arg5[%c0_10, %c0_11] : memref<16x128xbf16, #tpu.memory_space<vmem>>, vector<16x128xbf16>
      %c0_12 = arith.constant 0 : index
      %c0_13 = arith.constant 0 : index
      %12 = vector.load %arg6[%c0_12, %c0_13] : memref<32x128xbf16, #tpu.memory_space<vmem>>, vector<32x128xbf16>
      %c0_14 = arith.constant 0 : index
      %c0_15 = arith.constant 0 : index
      %13 = vector.load %arg7[%c0_14, %c0_15] : memref<1x128xf32, #tpu.memory_space<vmem>>, vector<1x128xf32>
      %c0_16 = arith.constant 0 : index
      %c0_17 = arith.constant 0 : index
      %c0_18 = arith.constant 0 : index
      %14 = vector.load %arg3[%c0_16, %c0_17, %c0_18] : memref<2x8x32xf32, #tpu.memory_space<vmem>>, vector<1x8x32xf32>
      %15 = vector.shape_cast %14 : vector<1x8x32xf32> to vector<8x32xf32>
      %c0_19 = arith.constant 0 : index
      %c0_20 = arith.constant 0 : index
      %c0_21 = arith.constant 0 : index
      %16 = vector.load %arg4[%c0_19, %c0_20, %c0_21] : memref<2x8x32xf32, #tpu.memory_space<vmem>>, vector<1x8x32xf32>
      %17 = vector.shape_cast %16 : vector<1x8x32xf32> to vector<8x32xf32>
      %cst_22 = arith.constant dense<0.000000e+00> : vector<8x128xf32>
      %18 = tpu.matmul %10, %11, %cst_22 {dimension_numbers = #tpu.dot_dimension_numbers<[1], [0], [0], [1], [0, 0, 1, 1], [], []>} : vector<8x16xbf16>, vector<16x128xbf16>, vector<8x128xf32> -> vector<8x128xf32>
      %19 = arith.truncf %15 : vector<8x32xf32> to vector<8x32xbf16>
      %cst_23 = arith.constant dense<0.000000e+00> : vector<8x128xf32>
      %20 = tpu.matmul %19, %12, %cst_23 {dimension_numbers = #tpu.dot_dimension_numbers<[1], [0], [0], [1], [0, 0, 1, 1], [], []>} : vector<8x32xbf16>, vector<32x128xbf16>, vector<8x128xf32> -> vector<8x128xf32>
      %21 = arith.addf %18, %20 : vector<8x128xf32>
      %22 = vector.broadcast %13 : vector<1x128xf32> to vector<8x128xf32>
      %23 = arith.addf %21, %22 : vector<8x128xf32>
      %24 = vector.extract_strided_slice %23 {offsets = [0, 0], sizes = [8, 32], strides = [1, 1]} : vector<8x128xf32> to vector<8x32xf32>
      %25 = arith.negf %24 : vector<8x32xf32>
      %26 = math.exp %25 : vector<8x32xf32>
      %cst_24 = arith.constant 1.000000e+00 : f32
      %27 = vector.broadcast %cst_24 : f32 to vector<8x32xf32>
      %28 = arith.addf %27, %26 : vector<8x32xf32>
      %29 = arith.divf %27, %28 : vector<8x32xf32>
      %30 = vector.extract_strided_slice %23 {offsets = [0, 32], sizes = [8, 32], strides = [1, 1]} : vector<8x128xf32> to vector<8x32xf32>
      %31 = arith.negf %30 : vector<8x32xf32>
      %32 = math.exp %31 : vector<8x32xf32>
      %cst_25 = arith.constant 1.000000e+00 : f32
      %33 = vector.broadcast %cst_25 : f32 to vector<8x32xf32>
      %34 = arith.addf %33, %32 : vector<8x32xf32>
      %35 = arith.divf %33, %34 : vector<8x32xf32>
      %36 = vector.extract_strided_slice %23 {offsets = [0, 64], sizes = [8, 32], strides = [1, 1]} : vector<8x128xf32> to vector<8x32xf32>
      %37 = math.tanh %36 : vector<8x32xf32>
      %38 = vector.extract_strided_slice %23 {offsets = [0, 96], sizes = [8, 32], strides = [1, 1]} : vector<8x128xf32> to vector<8x32xf32>
      %39 = arith.negf %38 : vector<8x32xf32>
      %40 = math.exp %39 : vector<8x32xf32>
      %cst_26 = arith.constant 1.000000e+00 : f32
      %41 = vector.broadcast %cst_26 : f32 to vector<8x32xf32>
      %42 = arith.addf %41, %40 : vector<8x32xf32>
      %43 = arith.divf %41, %42 : vector<8x32xf32>
      %44 = arith.mulf %35, %17 : vector<8x32xf32>
      %45 = arith.mulf %29, %37 : vector<8x32xf32>
      %46 = arith.addf %44, %45 : vector<8x32xf32>
      %47 = math.tanh %46 : vector<8x32xf32>
      %48 = arith.mulf %43, %47 : vector<8x32xf32>
      %c0_27 = arith.constant 0 : index
      %c0_28 = arith.constant 0 : index
      %c0_29 = arith.constant 0 : index
      %49 = vector.load %arg14[%c0_27, %c0_28, %c0_29] : memref<2x8x32xf32, #tpu.memory_space<vmem>>, vector<1x8x32xf32>
      %50 = vector.shape_cast %49 : vector<1x8x32xf32> to vector<8x32xf32>
      %51 = vector.shape_cast %48 : vector<8x32xf32> to vector<1x8x32xf32>
      tpu.vector_store %arg14[%c0_27, %c0_28, %c0_29], %51 {strides = array<i32>} : memref<2x8x32xf32, #tpu.memory_space<vmem>>, vector<1x8x32xf32>,
      %c0_30 = arith.constant 0 : index
      %c0_31 = arith.constant 0 : index
      %c0_32 = arith.constant 0 : index
      %52 = vector.load %arg15[%c0_30, %c0_31, %c0_32] : memref<2x8x32xf32, #tpu.memory_space<vmem>>, vector<1x8x32xf32>
      %53 = vector.shape_cast %52 : vector<1x8x32xf32> to vector<8x32xf32>
      %54 = vector.shape_cast %46 : vector<8x32xf32> to vector<1x8x32xf32>
      tpu.vector_store %arg15[%c0_30, %c0_31, %c0_32], %54 {strides = array<i32>} : memref<2x8x32xf32, #tpu.memory_space<vmem>>, vector<1x8x32xf32>,
      %55 = arith.truncf %48 : vector<8x32xf32> to vector<8x32xbf16>
      %c0_33 = arith.constant 0 : index
      %c0_34 = arith.constant 0 : index
      %56 = vector.load %arg8[%c0_33, %c0_34] : memref<32x128xbf16, #tpu.memory_space<vmem>>, vector<32x128xbf16>
      %c0_35 = arith.constant 0 : index
      %c0_36 = arith.constant 0 : index
      %57 = vector.load %arg9[%c0_35, %c0_36] : memref<32x128xbf16, #tpu.memory_space<vmem>>, vector<32x128xbf16>
      %c0_37 = arith.constant 0 : index
      %c0_38 = arith.constant 0 : index
      %58 = vector.load %arg10[%c0_37, %c0_38] : memref<1x128xf32, #tpu.memory_space<vmem>>, vector<1x128xf32>
      %c1 = arith.constant 1 : index
      %c0_39 = arith.constant 0 : index
      %c0_40 = arith.constant 0 : index
      %59 = vector.load %arg3[%c1, %c0_39, %c0_40] : memref<2x8x32xf32, #tpu.memory_space<vmem>>, vector<1x8x32xf32>
      %60 = vector.shape_cast %59 : vector<1x8x32xf32> to vector<8x32xf32>
      %c1_41 = arith.constant 1 : index
      %c0_42 = arith.constant 0 : index
      %c0_43 = arith.constant 0 : index
      %61 = vector.load %arg4[%c1_41, %c0_42, %c0_43] : memref<2x8x32xf32, #tpu.memory_space<vmem>>, vector<1x8x32xf32>
      %62 = vector.shape_cast %61 : vector<1x8x32xf32> to vector<8x32xf32>
      %cst_44 = arith.constant dense<0.000000e+00> : vector<8x128xf32>
      %63 = tpu.matmul %55, %56, %cst_44 {dimension_numbers = #tpu.dot_dimension_numbers<[1], [0], [0], [1], [0, 0, 1, 1], [], []>} : vector<8x32xbf16>, vector<32x128xbf16>, vector<8x128xf32> -> vector<8x128xf32>
      %64 = arith.truncf %60 : vector<8x32xf32> to vector<8x32xbf16>
      %cst_45 = arith.constant dense<0.000000e+00> : vector<8x128xf32>
      %65 = tpu.matmul %64, %57, %cst_45 {dimension_numbers = #tpu.dot_dimension_numbers<[1], [0], [0], [1], [0, 0, 1, 1], [], []>} : vector<8x32xbf16>, vector<32x128xbf16>, vector<8x128xf32> -> vector<8x128xf32>
      %66 = arith.addf %63, %65 : vector<8x128xf32>
      %67 = vector.broadcast %58 : vector<1x128xf32> to vector<8x128xf32>
      %68 = arith.addf %66, %67 : vector<8x128xf32>
      %69 = vector.extract_strided_slice %68 {offsets = [0, 0], sizes = [8, 32], strides = [1, 1]} : vector<8x128xf32> to vector<8x32xf32>
      %70 = arith.negf %69 : vector<8x32xf32>
      %71 = math.exp %70 : vector<8x32xf32>
      %cst_46 = arith.constant 1.000000e+00 : f32
      %72 = vector.broadcast %cst_46 : f32 to vector<8x32xf32>
      %73 = arith.addf %72, %71 : vector<8x32xf32>
      %74 = arith.divf %72, %73 : vector<8x32xf32>
      %75 = vector.extract_strided_slice %68 {offsets = [0, 32], sizes = [8, 32], strides = [1, 1]} : vector<8x128xf32> to vector<8x32xf32>
      %76 = arith.negf %75 : vector<8x32xf32>
      %77 = math.exp %76 : vector<8x32xf32>
      %cst_47 = arith.constant 1.000000e+00 : f32
      %78 = vector.broadcast %cst_47 : f32 to vector<8x32xf32>
      %79 = arith.addf %78, %77 : vector<8x32xf32>
      %80 = arith.divf %78, %79 : vector<8x32xf32>
      %81 = vector.extract_strided_slice %68 {offsets = [0, 64], sizes = [8, 32], strides = [1, 1]} : vector<8x128xf32> to vector<8x32xf32>
      %82 = math.tanh %81 : vector<8x32xf32>
      %83 = vector.extract_strided_slice %68 {offsets = [0, 96], sizes = [8, 32], strides = [1, 1]} : vector<8x128xf32> to vector<8x32xf32>
      %84 = arith.negf %83 : vector<8x32xf32>
      %85 = math.exp %84 : vector<8x32xf32>
      %cst_48 = arith.constant 1.000000e+00 : f32
      %86 = vector.broadcast %cst_48 : f32 to vector<8x32xf32>
      %87 = arith.addf %86, %85 : vector<8x32xf32>
      %88 = arith.divf %86, %87 : vector<8x32xf32>
      %89 = arith.mulf %80, %62 : vector<8x32xf32>
      %90 = arith.mulf %74, %82 : vector<8x32xf32>
      %91 = arith.addf %89, %90 : vector<8x32xf32>
      %92 = math.tanh %91 : vector<8x32xf32>
      %93 = arith.mulf %88, %92 : vector<8x32xf32>
      %c1_49 = arith.constant 1 : index
      %c0_50 = arith.constant 0 : index
      %c0_51 = arith.constant 0 : index
      %94 = vector.load %arg14[%c1_49, %c0_50, %c0_51] : memref<2x8x32xf32, #tpu.memory_space<vmem>>, vector<1x8x32xf32>
      %95 = vector.shape_cast %94 : vector<1x8x32xf32> to vector<8x32xf32>
      %96 = vector.shape_cast %93 : vector<8x32xf32> to vector<1x8x32xf32>
      tpu.vector_store %arg14[%c1_49, %c0_50, %c0_51], %96 {strides = array<i32>} : memref<2x8x32xf32, #tpu.memory_space<vmem>>, vector<1x8x32xf32>,
      %c1_52 = arith.constant 1 : index
      %c0_53 = arith.constant 0 : index
      %c0_54 = arith.constant 0 : index
      %97 = vector.load %arg15[%c1_52, %c0_53, %c0_54] : memref<2x8x32xf32, #tpu.memory_space<vmem>>, vector<1x8x32xf32>
      %98 = vector.shape_cast %97 : vector<1x8x32xf32> to vector<8x32xf32>
      %99 = vector.shape_cast %91 : vector<8x32xf32> to vector<1x8x32xf32>
      tpu.vector_store %arg15[%c1_52, %c0_53, %c0_54], %99 {strides = array<i32>} : memref<2x8x32xf32, #tpu.memory_space<vmem>>, vector<1x8x32xf32>,
      %100 = arith.truncf %93 : vector<8x32xf32> to vector<8x32xbf16>
      %c0_55 = arith.constant 0 : index
      %c0_56 = arith.constant 0 : index
      %101 = vector.load %arg16[%c0_55, %c0_56] : memref<8x32xbf16, #tpu.memory_space<vmem>>, vector<8x32xbf16>
      tpu.vector_store %arg16[%c0_55, %c0_56], %100 {strides = array<i32>} : memref<8x32xbf16, #tpu.memory_space<vmem>>, vector<8x32xbf16>,
    } else {
    }
    %c0 = arith.constant 0 : index
    %c0_1 = arith.constant 0 : index
    %3 = vector.load %arg16[%c0, %c0_1] : memref<8x32xbf16, #tpu.memory_space<vmem>>, vector<8x32xbf16>
    %c0_2 = arith.constant 0 : index
    %c0_3 = arith.constant 0 : index
    %4 = vector.load %arg11[%c0_2, %c0_3] : memref<32x128xbf16, #tpu.memory_space<vmem>>, vector<32x128xbf16>
    %cst = arith.constant dense<0.000000e+00> : vector<8x128xf32>
    %5 = tpu.matmul %3, %4, %cst {dimension_numbers = #tpu.dot_dimension_numbers<[1], [0], [0], [1], [0, 0, 1, 1], [], []>} : vector<8x32xbf16>, vector<32x128xbf16>, vector<8x128xf32> -> vector<8x128xf32>
    %c0_4 = arith.constant 0 : index
    %c0_5 = arith.constant 0 : index
    %6 = vector.load %arg12[%c0_4, %c0_5] : memref<1x128xf32, #tpu.memory_space<vmem>>, vector<1x128xf32>
    %7 = vector.broadcast %6 : vector<1x128xf32> to vector<8x128xf32>
    %8 = arith.addf %5, %7 : vector<8x128xf32>
    %c0_6 = arith.constant 0 : index
    %c0_7 = arith.constant 0 : index
    %9 = vector.load %arg13[%c0_6, %c0_7] : memref<8x128xf32, #tpu.memory_space<vmem>>, vector<8x128xf32>
    tpu.vector_store %arg13[%c0_6, %c0_7], %8 {strides = array<i32>} : memref<8x128xf32, #tpu.memory_space<vmem>>, vector<8x128xf32>,
    return
  }
  func.func @transform_0(%arg0: i32, %arg1: i32) -> (i32, i32) {
    %c0_i32 = arith.constant 0 : i32
    %c0_i32_0 = arith.constant 0 : i32
    return %arg0, %c0_i32 : i32, i32
  }
  func.func @transform_1(%arg0: i32, %arg1: i32) -> (i32, i32, i32) {
    %c0_i32 = arith.constant 0 : i32
    %c0_i32_0 = arith.constant 0 : i32
    %c0_i32_1 = arith.constant 0 : i32
    return %c0_i32, %arg0, %c0_i32_0 : i32, i32, i32
  }
  func.func @transform_2(%arg0: i32, %arg1: i32) -> (i32, i32, i32) {
    %c0_i32 = arith.constant 0 : i32
    %c0_i32_0 = arith.constant 0 : i32
    %c0_i32_1 = arith.constant 0 : i32
    return %c0_i32, %arg0, %c0_i32_0 : i32, i32, i32
  }
  func.func @transform_3(%arg0: i32, %arg1: i32) -> (i32, i32) {
    %c0_i32 = arith.constant 0 : i32
    %c0_i32_0 = arith.constant 0 : i32
    %c0_i32_1 = arith.constant 0 : i32
    return %c0_i32, %c0_i32_0 : i32, i32
  }
  func.func @transform_4(%arg0: i32, %arg1: i32) -> (i32, i32) {
    %c0_i32 = arith.constant 0 : i32
    %c0_i32_0 = arith.constant 0 : i32
    %c0_i32_1 = arith.constant 0 : i32
    return %c0_i32, %c0_i32_0 : i32, i32
  }
  func.func @transform_5(%arg0: i32, %arg1: i32) -> (i32, i32) {
    %c0_i32 = arith.constant 0 : i32
    %c0_i32_0 = arith.constant 0 : i32
    %c0_i32_1 = arith.constant 0 : i32
    return %c0_i32, %c0_i32_0 : i32, i32
  }
  func.func @transform_6(%arg0: i32, %arg1: i32) -> (i32, i32) {
    %c0_i32 = arith.constant 0 : i32
    %c0_i32_0 = arith.constant 0 : i32
    %c0_i32_1 = arith.constant 0 : i32
    return %c0_i32, %c0_i32_0 : i32, i32
  }
  func.func @transform_7(%arg0: i32, %arg1: i32) -> (i32, i32) {
    %c0_i32 = arith.constant 0 : i32
    %c0_i32_0 = arith.constant 0 : i32
    %c0_i32_1 = arith.constant 0 : i32
    return %c0_i32, %c0_i32_0 : i32, i32
  }
  func.func @transform_8(%arg0: i32, %arg1: i32) -> (i32, i32) {
    %c0_i32 = arith.constant 0 : i32
    %c0_i32_0 = arith.constant 0 : i32
    %c0_i32_1 = arith.constant 0 : i32
    return %c0_i32, %c0_i32_0 : i32, i32
  }
  func.func @transform_9(%arg0: i32, %arg1: i32) -> (i32, i32) {
    %c0_i32 = arith.constant 0 : i32
    %c0_i32_0 = arith.constant 0 : i32
    return %c0_i32, %arg1 : i32, i32
  }
  func.func @transform_10(%arg0: i32, %arg1: i32) -> (i32, i32) {
    %c0_i32 = arith.constant 0 : i32
    %c0_i32_0 = arith.constant 0 : i32
    return %c0_i32, %arg1 : i32, i32
  }
  func.func @transform_11(%arg0: i32, %arg1: i32) -> (i32, i32) {
    %c0_i32 = arith.constant 0 : i32
    return %arg0, %arg1 : i32, i32
  }
  func.func @transform_12(%arg0: i32, %arg1: i32) -> (i32, i32, i32) {
    %c0_i32 = arith.constant 0 : i32
    %c0_i32_0 = arith.constant 0 : i32
    %c0_i32_1 = arith.constant 0 : i32
    return %c0_i32, %arg0, %c0_i32_0 : i32, i32, i32
  }
  func.func @transform_13(%arg0: i32, %arg1: i32) -> (i32, i32, i32) {
    %c0_i32 = arith.constant 0 : i32
    %c0_i32_0 = arith.constant 0 : i32
    %c0_i32_1 = arith.constant 0 : i32
    return %c0_i32, %arg0, %c0_i32_0 : i32, i32, i32
  }
}

</mosaic_0001>

<llo_original>
// kernel: tpu_custom_call.1
$region0: #{tpu_custom_call.1}
  #allocation0 [shape = 'u32[]', space=smem, size = 0x4, offset = 0x4, fixed_abs, tag = 'smem constant byte address 0x4 - core index']
  #allocation1 [shape = 'u32[72,128]{1,0:T(1,128)}', space=vmem, size = 0x9000, scoped, tag = 'internal scratch']
  #allocation2 [shape = 'bf16[8,32]{1,0:T(8,128)(2,1)}', space=vmem, size = 0x800, scoped, tag = 'scratch operand']
  %s0 = inlined_call_operand.hbm [shape: bf16[8,16], index: 0, kind: input, shape index: {}]
  %s1 = inlined_call_operand.hbm [shape: f32[2,8,32], index: 1, kind: input, shape index: {}]
  %s2 = inlined_call_operand.hbm [shape: f32[2,8,32], index: 2, kind: input, shape index: {}]
  %s3 = inlined_call_operand.hbm [shape: bf16[16,128], index: 3, kind: input, shape index: {}]
  %s4 = inlined_call_operand.hbm [shape: bf16[32,128], index: 4, kind: input, shape index: {}]
  %s5 = inlined_call_operand.vmem [shape: f32[1,128], index: 5, kind: input, shape index: {}]
  %s6 = inlined_call_operand.hbm [shape: bf16[32,128], index: 6, kind: input, shape index: {}]
  %s7 = inlined_call_operand.hbm [shape: bf16[32,128], index: 7, kind: input, shape index: {}]
  %s8 = inlined_call_operand.vmem [shape: f32[1,128], index: 8, kind: input, shape index: {}]
  %s9 = inlined_call_operand.hbm [shape: bf16[32,128], index: 9, kind: input, shape index: {}]
  %s10 = inlined_call_operand.vmem [shape: f32[1,128], index: 10, kind: input, shape index: {}]
  %s11 = inlined_call_operand.hbm [shape: f32[8,128], index: 11, kind: output, shape index: {0}]
  %s12 = inlined_call_operand.hbm [shape: f32[2,8,32], index: 12, kind: output, shape index: {1}]
  %s13 = inlined_call_operand.hbm [shape: f32[2,8,32], index: 13, kind: output, shape index: {2}]
  %14 = xla_tuple %s11, %s12, %s13
  %s15 = sld [smem:[#allocation0]]
  $region106: #{tpu_custom_call.1} parent=0
    _
  %s17 = ssub.s32 1, %s15
  %s18 = scalar_select 0, %s17, %s15
  $region1: #{tpu_custom_call.1} parent=0
    #allocation3 [shape = 'u8[2048]{0}', space=vmem, size = 0x800, scoped, tag = 'input window, operand 0, single buffered']
    #allocation4 [shape = 's32[1]{0}', space=sflag, size = 0x4, scoped, tag = 'scoped memory for tpu_custom_call.1']
    #allocation5 [shape = 's32[1]{0}', space=sflag, size = 0x4, scoped, tag = 'scoped memory for tpu_custom_call.1']
    #allocation6 [shape = 'u8[8192]{0}', space=vmem, size = 0x2000, scoped, tag = 'input window, operand 1, single buffered']
    #allocation7 [shape = 's32[1]{0}', space=sflag, size = 0x4, scoped, tag = 'scoped memory for tpu_custom_call.1']
    #allocation8 [shape = 'u8[8192]{0}', space=vmem, size = 0x2000, scoped, tag = 'input window, operand 2, single buffered']
    #allocation9 [shape = 'u8[4096]{0}', space=vmem, size = 0x1000, scoped, tag = 'input window, operand 3, single buffered']
    #allocation10 [shape = 's32[1]{0}', space=sflag, size = 0x4, scoped, tag = 'scoped memory for tpu_custom_call.1']
    #allocation11 [shape = 'u8[8192]{0}', space=vmem, size = 0x2000, scoped, tag = 'input window, operand 4, single buffered']
    #allocation12 [shape = 'u8[8192]{0}', space=vmem, size = 0x2000, scoped, tag = 'input window, operand 6, single buffered']
    #allocation13 [shape = 's32[1]{0}', space=sflag, size = 0x4, scoped, tag = 'scoped memory for tpu_custom_call.1']
    #allocation14 [shape = 'u8[8192]{0}', space=vmem, size = 0x2000, scoped, tag = 'input window, operand 7, single buffered']
    #allocation15 [shape = 'u8[8192]{0}', space=vmem, size = 0x2000, scoped, tag = 'input window, operand 9, single buffered']
    #allocation16 [shape = 's32[1]{0}', space=sflag, size = 0x4, scoped, tag = 'scoped memory for tpu_custom_call.1']
    #allocation17 [shape = 'u8[4096]{0}', space=vmem, size = 0x1000, scoped, tag = 'output window, operand 0, single buffered']
    #allocation18 [shape = 'u8[8192]{0}', space=vmem, size = 0x2000, scoped, tag = 'output window, operand 1, single buffered']
    #allocation19 [shape = 's32[1]{0}', space=sflag, size = 0x4, scoped, tag = 'scoped memory for tpu_custom_call.1']
    #allocation20 [shape = 'u8[8192]{0}', space=vmem, size = 0x2000, scoped, tag = 'output window, operand 2, single buffered']
    %19 = vsyncpa [#allocation4], 0
    %20 = vsyncpa [#allocation7], 0
    %21 = vsyncpa [#allocation10], 0
    %22 = vsyncpa [#allocation13], 0
    %23 = vsyncpa [#allocation16], 0
    %24 = vsyncpa [#allocation5], 0
    %25 = vsyncpa [#allocation19], 0
    // Predicated region
    $region2: #{tpu_custom_call.1} parent=1 // pred_check
      _
    $region3: #{tpu_custom_call.1} parent=1 // pred_check_branch
      %27 = sbr.rel (0) target = $region5
    $region4: #{tpu_custom_call.1} parent=1 // pred_region
      %29 = vsyncadd [#allocation4], 0
      %s31 = sshll.u32 %s0, 4
      %s32 = int_to_ptr.hbm [resolvable:$true] %s31
      %s33 = sshll.u32 [#allocation3], 4
      %s34 = int_to_ptr.vmem [resolvable:$true] %s33
      %36 = dma.hbm_to_vmem [thread:$0]  %s32, 64, %s34, [#allocation4]
    $region5: #{tpu_custom_call.1} parent=1 // pred_fallthru
      _
    // Predicated region
    $region6: #{tpu_custom_call.1} parent=1 // pred_check
      _
    $region7: #{tpu_custom_call.1} parent=1 // pred_check_branch
      %38 = sbr.rel (0) target = $region9
    $region8: #{tpu_custom_call.1} parent=1 // pred_region
      %40 = vsyncadd [#allocation7], 0
      %s41 = sshll.u32 %s1, 4
      %s42 = int_to_ptr.hbm [resolvable:$true] %s41
      %s43 = sshll.u32 [#allocation6], 4
      %s44 = int_to_ptr.vmem [resolvable:$true] %s43
      %49 = dma.hbm_to_vmem [thread:$0]  %s42, 256, %s44, [#allocation7], 128, 128, 8
    $region9: #{tpu_custom_call.1} parent=1 // pred_fallthru
      _
    // Predicated region
    $region10: #{tpu_custom_call.1} parent=1 // pred_check
      _
    $region11: #{tpu_custom_call.1} parent=1 // pred_check_branch
      %51 = sbr.rel (0) target = $region13
    $region12: #{tpu_custom_call.1} parent=1 // pred_region
      %53 = vsyncadd [#allocation7], 0
      %s54 = sshll.u32 %s2, 4
      %s55 = int_to_ptr.hbm [resolvable:$true] %s54
      %s56 = sshll.u32 [#allocation8], 4
      %s57 = int_to_ptr.vmem [resolvable:$true] %s56
      %62 = dma.hbm_to_vmem [thread:$0]  %s55, 256, %s57, [#allocation7], 128, 128, 8
    $region13: #{tpu_custom_call.1} parent=1 // pred_fallthru
      _
    // Predicated region
    $region14: #{tpu_custom_call.1} parent=1 // pred_check
      _
    $region15: #{tpu_custom_call.1} parent=1 // pred_check_branch
      %64 = sbr.rel (0) target = $region17
    $region16: #{tpu_custom_call.1} parent=1 // pred_region
      %66 = vsyncadd [#allocation10], 0
      %s67 = sshll.u32 %s3, 4
      %s68 = int_to_ptr.hbm [resolvable:$true] %s67
      %s69 = sshll.u32 [#allocation9], 4
      %s70 = int_to_ptr.vmem [resolvable:$true] %s69
      %75 = dma.hbm_to_vmem [thread:$0]  %s68, 128, %s70, [#allocation10], 64, 64, 4
    $region17: #{tpu_custom_call.1} parent=1 // pred_fallthru
      _
    // Predicated region
    $region18: #{tpu_custom_call.1} parent=1 // pred_check
      _
    $region19: #{tpu_custom_call.1} parent=1 // pred_check_branch
      %77 = sbr.rel (0) target = $region21
    $region20: #{tpu_custom_call.1} parent=1 // pred_region
      %79 = vsyncadd [#allocation10], 0
      %s80 = sshll.u32 %s4, 4
      %s81 = int_to_ptr.hbm [resolvable:$true] %s80
      %s82 = sshll.u32 [#allocation11], 4
      %s83 = int_to_ptr.vmem [resolvable:$true] %s82
      %88 = dma.hbm_to_vmem [thread:$0]  %s81, 256, %s83, [#allocation10], 64, 64, 4
    $region21: #{tpu_custom_call.1} parent=1 // pred_fallthru
      _
    // Predicated region
    $region22: #{tpu_custom_call.1} parent=1 // pred_check
      _
    $region23: #{tpu_custom_call.1} parent=1 // pred_check_branch
      %90 = sbr.rel (0) target = $region25
    $region24: #{tpu_custom_call.1} parent=1 // pred_region
      _
    $region25: #{tpu_custom_call.1} parent=1 // pred_fallthru
      _
    // Predicated region
    $region26: #{tpu_custom_call.1} parent=1 // pred_check
      _
    $region27: #{tpu_custom_call.1} parent=1 // pred_check_branch
      %92 = sbr.rel (0) target = $region29
    $region28: #{tpu_custom_call.1} parent=1 // pred_region
      %94 = vsyncadd [#allocation13], 0
      %s95 = sshll.u32 %s6, 4
      %s96 = int_to_ptr.hbm [resolvable:$true] %s95
      %s97 = sshll.u32 [#allocation12], 4
      %s98 = int_to_ptr.vmem [resolvable:$true] %s97
      %103 = dma.hbm_to_vmem [thread:$0]  %s96, 256, %s98, [#allocation13], 64, 64, 4
    $region29: #{tpu_custom_call.1} parent=1 // pred_fallthru
      _
    // Predicated region
    $region30: #{tpu_custom_call.1} parent=1 // pred_check
      _
    $region31: #{tpu_custom_call.1} parent=1 // pred_check_branch
      %105 = sbr.rel (0) target = $region33
    $region32: #{tpu_custom_call.1} parent=1 // pred_region
      %107 = vsyncadd [#allocation13], 0
      %s108 = sshll.u32 %s7, 4
      %s109 = int_to_ptr.hbm [resolvable:$true] %s108
      %s110 = sshll.u32 [#allocation14], 4
      %s111 = int_to_ptr.vmem [resolvable:$true] %s110
      %116 = dma.hbm_to_vmem [thread:$0]  %s109, 256, %s111, [#allocation13], 64, 64, 4
    $region33: #{tpu_custom_call.1} parent=1 // pred_fallthru
      _
    // Predicated region
    $region34: #{tpu_custom_call.1} parent=1 // pred_check
      _
    $region35: #{tpu_custom_call.1} parent=1 // pred_check_branch
      %118 = sbr.rel (0) target = $region37
    $region36: #{tpu_custom_call.1} parent=1 // pred_region
      _
    $region37: #{tpu_custom_call.1} parent=1 // pred_fallthru
      _
    // Predicated region
    $region38: #{tpu_custom_call.1} parent=1 // pred_check
      _
    $region39: #{tpu_custom_call.1} parent=1 // pred_check_branch
      %120 = sbr.rel (0) target = $region41
    $region40: #{tpu_custom_call.1} parent=1 // pred_region
      %122 = vsyncadd [#allocation16], 0
      %s123 = sshll.u32 %s9, 4
      %s124 = int_to_ptr.hbm [resolvable:$true] %s123
      %s125 = sshll.u32 [#allocation15], 4
      %s126 = int_to_ptr.vmem [resolvable:$true] %s125
      %131 = dma.hbm_to_vmem [thread:$0]  %s124, 256, %s126, [#allocation16], 64, 64, 4
    $region41: #{tpu_custom_call.1} parent=1 // pred_fallthru
      _
    // Predicated region
    $region42: #{tpu_custom_call.1} parent=1 // pred_check
      _
    $region43: #{tpu_custom_call.1} parent=1 // pred_check_branch
      %133 = sbr.rel (0) target = $region45
    $region44: #{tpu_custom_call.1} parent=1 // pred_region
      _
    $region45: #{tpu_custom_call.1} parent=1 // pred_fallthru
      _
    // Predicated region
    $region46: #{tpu_custom_call.1} parent=1 // pred_check
      _
    $region47: #{tpu_custom_call.1} parent=1 // pred_check_branch
      %135 = sbr.rel (0) target = $region49
    $region48: #{tpu_custom_call.1} parent=1 // pred_region
      %137 = dma.done [#allocation4], 64
    $region49: #{tpu_custom_call.1} parent=1 // pred_fallthru
      _
    // Predicated region
    $region50: #{tpu_custom_call.1} parent=1 // pred_check
      _
    $region51: #{tpu_custom_call.1} parent=1 // pred_check_branch
      %139 = sbr.rel (0) target = $region53
    $region52: #{tpu_custom_call.1} parent=1 // pred_region
      %141 = dma.done [#allocation7], 256
    $region53: #{tpu_custom_call.1} parent=1 // pred_fallthru
      _
    // Predicated region
    $region54: #{tpu_custom_call.1} parent=1 // pred_check
      _
    $region55: #{tpu_custom_call.1} parent=1 // pred_check_branch
      %143 = sbr.rel (0) target = $region57
    $region56: #{tpu_custom_call.1} parent=1 // pred_region
      %145 = dma.done [#allocation7], 256
    $region57: #{tpu_custom_call.1} parent=1 // pred_fallthru
      _
    // Predicated region
    $region58: #{tpu_custom_call.1} parent=1 // pred_check
      _
    $region59: #{tpu_custom_call.1} parent=1 // pred_check_branch
      %147 = sbr.rel (0) target = $region61
    $region60: #{tpu_custom_call.1} parent=1 // pred_region
      %149 = dma.done [#allocation10], 128
    $region61: #{tpu_custom_call.1} parent=1 // pred_fallthru
      _
    // Predicated region
    $region62: #{tpu_custom_call.1} parent=1 // pred_check
      _
    $region63: #{tpu_custom_call.1} parent=1 // pred_check_branch
      %151 = sbr.rel (0) target = $region65
    $region64: #{tpu_custom_call.1} parent=1 // pred_region
      %153 = dma.done [#allocation10], 256
    $region65: #{tpu_custom_call.1} parent=1 // pred_fallthru
      _
    // Predicated region
    $region66: #{tpu_custom_call.1} parent=1 // pred_check
      _
    $region67: #{tpu_custom_call.1} parent=1 // pred_check_branch
      %155 = sbr.rel (0) target = $region69
    $region68: #{tpu_custom_call.1} parent=1 // pred_region
      %157 = dma.done [#allocation13], 256
    $region69: #{tpu_custom_call.1} parent=1 // pred_fallthru
      _
    // Predicated region
    $region70: #{tpu_custom_call.1} parent=1 // pred_check
      _
    $region71: #{tpu_custom_call.1} parent=1 // pred_check_branch
      %159 = sbr.rel (0) target = $region73
    $region72: #{tpu_custom_call.1} parent=1 // pred_region
      %161 = dma.done [#allocation13], 256
    $region73: #{tpu_custom_call.1} parent=1 // pred_fallthru
      _
    // Predicated region
    $region74: #{tpu_custom_call.1} parent=1 // pred_check
      _
    $region75: #{tpu_custom_call.1} parent=1 // pred_check_branch
      %163 = sbr.rel (0) target = $region77
    $region76: #{tpu_custom_call.1} parent=1 // pred_region
      %165 = dma.done [#allocation16], 256
    $region77: #{tpu_custom_call.1} parent=1 // pred_fallthru
      _
    %p167 = scmp.eq.s32.totalorder 0, 0
    // Predicated region
    $region78: #{tpu_custom_call.1} parent=1 // pred_check
      %p168 = pneg %p167
    $region79: #{tpu_custom_call.1} parent=1 // pred_check_branch
      %170 = sbr.rel (%p168) target = $region81
    $region80: #{tpu_custom_call.1} parent=1 // pred_region
      %v171 = vld [vmem:[#allocation3] sm:$0xf]
      %v172 = vld [vmem:[#allocation9] sm:$0xf]
      %v173 = vld [vmem:[#allocation9 + $0x4] sm:$0xf]
      %v174 = vld [vmem:[#allocation11] sm:$0xf]
      %v175 = vld [vmem:[#allocation11 + $0x4] sm:$0xf]
      %v176 = vld [vmem:[#allocation11 + $0x8] sm:$0xf]
      %v177 = vld [vmem:[#allocation11 + $0xc] sm:$0xf]
      %v178 = vld [vmem:[%s5] sm:$0x1]
      %v179 = vld [vmem:[#allocation6] sm:$0xff]
      %v180 = vld [vmem:[#allocation8] sm:$0xff]
      %v181 = vpack.c.bf16 %v179, %v179
      %v186 = vunpack.c.l.b16 %v174
      %v187 = vunpack.c.l.b16 %v175
      %v188 = vunpack.c.l.b16 %v176
      %v189 = vunpack.c.l.b16 %v177
      %v190 = vpack.c.b16 %v187, %v186
      %v191 = vpack.c.b16 %v189, %v188
      %vm194 = vcmask 261120
      %v196 = vsel %vm194, %v181, 0
      %198 = vmatpush.bf16.msra.mxu0 0
      %199 = vmatpush.bf16.msra.mxu0 0
      %200 = vmatpush.bf16.msra.mxu0 0
      %201 = vmatpush.bf16.msra.mxu0 0
      %202 = vmatpush.bf16.msra.mxu0 0
      %203 = vmatpush.bf16.msra.mxu0 0
      %204 = vmatpush.bf16.msra.mxu0 %v191
      %205 = vmatpush.bf16.msra.mxu0 %v190
      %206 = vmatmul.bf16.gmra.mxu0 %v196
      %v207 = vpop.f32.mrf.mxu0
      %v208 = vadd.f32 0.0, %v207
      %v209 = vpop.f32.mrf.mxu0
      %210 = vdwg.mxu0
      %v213 = vunpack.c.l.b16 %v172
      %v214 = vunpack.c.l.b16 %v173
      %v215 = vpack.c.b16 %v214, %v213
      %vm217 = vcmask 130048
      %v219 = vsel %vm217, %v171, 0
      %221 = vmatpush.bf16.msra.mxu0 0
      %222 = vmatpush.bf16.msra.mxu0 0
      %223 = vmatpush.bf16.msra.mxu0 0
      %224 = vmatpush.bf16.msra.mxu0 0
      %225 = vmatpush.bf16.msra.mxu0 0
      %226 = vmatpush.bf16.msra.mxu0 0
      %227 = vmatpush.bf16.msra.mxu0 0
      %228 = vmatpush.bf16.msra.mxu0 %v215
      %229 = vmatmul.bf16.gmra.mxu0 %v219
      %v230 = vpop.f32.mrf.mxu0
      %v231 = vadd.f32 %v208, %v230
      %v232 = vpop.f32.mrf.mxu0
      %233 = vdwg.mxu0
      %v235 = vperm.slane %v178, 0
      %v237 = vadd.f32 %v231, %v235
      %v238 = vxor.u32 %v237, 2147483648
      %v239 = vmul.f32 %v238, 1.442695
      %v240 = vpow.pop %v239
      %v241 = vadd.f32 %v240, 1.0
      %v242 = vrcp.pop %v241
      %v243 = vmul.f32 %v241, %v242
      %v244 = vsub.f32 1.0, %v243
      %v245 = vmul.f32 %v242, %v244
      %v246 = vadd.f32 %v242, %v245
      %vm247 = vweird.f32 %v241
      %vm248 = vweird.f32 %v242
      %vm249 = vmor %vm247, %vm248
      %v250 = vsel %vm249, %v242, %v246
      %v251 = vand.u32 2147483647, %v241
      %vm252 = vcmp.eq.f32.partialorder %v251, 8.507059e+37
      %v253 = vand.u32 %v241, 2147483648
      %v254 = vor.u32 1.1754944e-38, %v253
      %v255 = vsel %vm252, %v254, %v250
      %v256 = vmul.f32 1.0, %v255
      %v257 = vtanh.pop %v237
      %259 = vrot.lane.b32.xlu0 %v180, 32
      %v260 = vpop.permute.xlu0 %259
      %v262 = vmul.f32 %v256, %v260
      %264 = vrot.lane.b32.xlu0 %v257, 64
      %v265 = vpop.permute.xlu0 %264
      %v267 = vmul.f32 %v256, %v265
      %269 = vrot.lane.b32.xlu0 %v267, 32
      %v270 = vpop.permute.xlu0 %269
      %v272 = vadd.f32 %v262, %v270
      %v273 = vtanh.pop %v272
      %275 = vrot.lane.b32.xlu0 %v273, 64
      %v276 = vpop.permute.xlu0 %275
      %v278 = vmul.f32 %v256, %v276
      %280 = vrot.lane.b32.xlu0 %v278, 32
      %v281 = vpop.permute.xlu0 %280
      %283 = vst.msk [vmem:[#allocation18] sm:$0xff] %vm194, %v281
      %285 = vrot.lane.b32.xlu0 %v272, 96
      %v286 = vpop.permute.xlu0 %285
      %288 = vst.msk [vmem:[#allocation20] sm:$0xff] %vm194, %v286
      %v289 = vpack.c.bf16 %v278, %v278
      %v290 = vld [vmem:[#allocation12] sm:$0xf]
      %v291 = vld [vmem:[#allocation12 + $0x4] sm:$0xf]
      %v292 = vld [vmem:[#allocation12 + $0x8] sm:$0xf]
      %v293 = vld [vmem:[#allocation12 + $0xc] sm:$0xf]
      %v294 = vld [vmem:[#allocation14] sm:$0xf]
      %v295 = vld [vmem:[#allocation14 + $0x4] sm:$0xf]
      %v296 = vld [vmem:[#allocation14 + $0x8] sm:$0xf]
      %v297 = vld [vmem:[#allocation14 + $0xc] sm:$0xf]
      %v298 = vld [vmem:[%s8] sm:$0x1]
      %s299 = scalar_lea.vmem [#allocation6], 8
      %v300 = vld [vmem:[%s299] sm:$0xff]
      %s301 = scalar_lea.vmem [#allocation8], 8
      %v302 = vld [vmem:[%s301] sm:$0xff]
      %v303 = vpack.c.bf16 %v300, %v300
      %v308 = vunpack.c.l.b16 %v294
      %v309 = vunpack.c.l.b16 %v295
      %v310 = vunpack.c.l.b16 %v296
      %v311 = vunpack.c.l.b16 %v297
      %v312 = vpack.c.b16 %v309, %v308
      %v313 = vpack.c.b16 %v311, %v310
      %v317 = vsel %vm194, %v303, 0
      %319 = vmatpush.bf16.msra.mxu0 0
      %320 = vmatpush.bf16.msra.mxu0 0
      %321 = vmatpush.bf16.msra.mxu0 0
      %322 = vmatpush.bf16.msra.mxu0 0
      %323 = vmatpush.bf16.msra.mxu0 0
      %324 = vmatpush.bf16.msra.mxu0 0
      %325 = vmatpush.bf16.msra.mxu0 %v313
      %326 = vmatpush.bf16.msra.mxu0 %v312
      %327 = vmatmul.bf16.gmra.mxu0 %v317
      %v328 = vpop.f32.mrf.mxu0
      %v329 = vadd.f32 0.0, %v328
      %v330 = vpop.f32.mrf.mxu0
      %331 = vdwg.mxu0
      %333 = vrot.lane.b32.xlu0 %v289, 32
      %v334 = vpop.permute.xlu0 %333
      %v339 = vunpack.c.l.b16 %v290
      %v340 = vunpack.c.l.b16 %v291
      %v341 = vunpack.c.l.b16 %v292
      %v342 = vunpack.c.l.b16 %v293
      %v343 = vpack.c.b16 %v340, %v339
      %v344 = vpack.c.b16 %v342, %v341
      %v348 = vsel %vm194, %v334, 0
      %350 = vmatpush.bf16.msra.mxu0 0
      %351 = vmatpush.bf16.msra.mxu0 0
      %352 = vmatpush.bf16.msra.mxu0 0
      %353 = vmatpush.bf16.msra.mxu0 0
      %354 = vmatpush.bf16.msra.mxu0 0
      %355 = vmatpush.bf16.msra.mxu0 0
      %356 = vmatpush.bf16.msra.mxu0 %v344
      %357 = vmatpush.bf16.msra.mxu0 %v343
      %358 = vmatmul.bf16.gmra.mxu0 %v348
      %v359 = vpop.f32.mrf.mxu0
      %v360 = vadd.f32 %v329, %v359
      %v361 = vpop.f32.mrf.mxu0
      %362 = vdwg.mxu0
      %v364 = vperm.slane %v298, 0
      %v366 = vadd.f32 %v360, %v364
      %v367 = vxor.u32 %v366, 2147483648
      %v368 = vmul.f32 %v367, 1.442695
      %v369 = vpow.pop %v368
      %v370 = vadd.f32 %v369, 1.0
      %v371 = vrcp.pop %v370
      %v372 = vmul.f32 %v370, %v371
      %v373 = vsub.f32 1.0, %v372
      %v374 = vmul.f32 %v371, %v373
      %v375 = vadd.f32 %v371, %v374
      %vm376 = vweird.f32 %v370
      %vm377 = vweird.f32 %v371
      %vm378 = vmor %vm376, %vm377
      %v379 = vsel %vm378, %v371, %v375
      %v380 = vand.u32 2147483647, %v370
      %vm381 = vcmp.eq.f32.partialorder %v380, 8.507059e+37
      %v382 = vand.u32 %v370, 2147483648
      %v383 = vor.u32 1.1754944e-38, %v382
      %v384 = vsel %vm381, %v383, %v379
      %v385 = vmul.f32 1.0, %v384
      %v386 = vtanh.pop %v366
      %388 = vrot.lane.b32.xlu0 %v302, 32
      %v389 = vpop.permute.xlu0 %388
      %v391 = vmul.f32 %v385, %v389
      %393 = vrot.lane.b32.xlu0 %v386, 64
      %v394 = vpop.permute.xlu0 %393
      %v396 = vmul.f32 %v385, %v394
      %398 = vrot.lane.b32.xlu0 %v396, 32
      %v399 = vpop.permute.xlu0 %398
      %v401 = vadd.f32 %v391, %v399
      %v402 = vtanh.pop %v401
      %404 = vrot.lane.b32.xlu0 %v402, 64
      %v405 = vpop.permute.xlu0 %404
      %v407 = vmul.f32 %v385, %v405
      %409 = vrot.lane.b32.xlu0 %v407, 32
      %v410 = vpop.permute.xlu0 %409
      %s412 = scalar_lea.vmem [#allocation18], 8
      %413 = vst.msk [vmem:[%s412] sm:$0xff] %vm194, %v410
      %415 = vrot.lane.b32.xlu0 %v401, 96
      %v416 = vpop.permute.xlu0 %415
      %s418 = scalar_lea.vmem [#allocation20], 8
      %419 = vst.msk [vmem:[%s418] sm:$0xff] %vm194, %v416
      %v420 = vpack.c.bf16 %v407, %v407
      %422 = vrot.lane.b32.xlu0 %v420, 32
      %v423 = vpop.permute.xlu0 %422
      %vm425 = vcmask 257024
      %426 = vst.msk [vmem:[#allocation2] sm:$0xf] %vm425, %v423
    $region81: #{tpu_custom_call.1} parent=1 // pred_fallthru
      _
    %v427 = vld [vmem:[#allocation2] sm:$0xf]
    %v428 = vld [vmem:[#allocation15] sm:$0xf]
    %v429 = vld [vmem:[#allocation15 + $0x4] sm:$0xf]
    %v430 = vld [vmem:[#allocation15 + $0x8] sm:$0xf]
    %v431 = vld [vmem:[#allocation15 + $0xc] sm:$0xf]
    %v432 = vld [vmem:[%s10] sm:$0x1]
    %v434 = vperm.slane %v432, 0
    %v440 = vunpack.c.l.b16 %v428
    %v441 = vunpack.c.l.b16 %v429
    %v442 = vunpack.c.l.b16 %v430
    %v443 = vunpack.c.l.b16 %v431
    %v444 = vpack.c.b16 %v441, %v440
    %v445 = vpack.c.b16 %v443, %v442
    %vm448 = vcmask 261120
    %v450 = vsel %vm448, %v427, 0
    %452 = vmatpush.bf16.msra.mxu0 0
    %453 = vmatpush.bf16.msra.mxu0 0
    %454 = vmatpush.bf16.msra.mxu0 0
    %455 = vmatpush.bf16.msra.mxu0 0
    %456 = vmatpush.bf16.msra.mxu0 0
    %457 = vmatpush.bf16.msra.mxu0 0
    %458 = vmatpush.bf16.msra.mxu0 %v445
    %459 = vmatpush.bf16.msra.mxu0 %v444
    %460 = vmatmul.bf16.gmra.mxu0 %v450
    %v461 = vpop.f32.mrf.mxu0
    %v462 = vadd.f32 %v434, %v461
    %v463 = vpop.f32.mrf.mxu0
    %464 = vdwg.mxu0
    %465 = vst [vmem:[#allocation17] sm:$0xff] %v462
    // Predicated region
    $region82: #{tpu_custom_call.1} parent=1 // pred_check
      _
    $region83: #{tpu_custom_call.1} parent=1 // pred_check_branch
      %467 = sbr.rel (0) target = $region85
    $region84: #{tpu_custom_call.1} parent=1 // pred_region
      %469 = vsyncadd [#allocation5], 0
      %s471 = sshll.u32 [#allocation17], 4
      %s472 = int_to_ptr.vmem [resolvable:$true] %s471
      %s473 = sshll.u32 %s11, 4
      %s474 = int_to_ptr.hbm [resolvable:$true] %s473
      %476 = dma.vmem_to_hbm [thread:$0]  %s472, 128, %s474, [#allocation5]
    $region85: #{tpu_custom_call.1} parent=1 // pred_fallthru
      _
    // Predicated region
    $region86: #{tpu_custom_call.1} parent=1 // pred_check
      _
    $region87: #{tpu_custom_call.1} parent=1 // pred_check_branch
      %478 = sbr.rel (0) target = $region89
    $region88: #{tpu_custom_call.1} parent=1 // pred_region
      %480 = vsyncadd [#allocation19], 0
      %s481 = sshll.u32 [#allocation18], 4
      %s482 = int_to_ptr.vmem [resolvable:$true] %s481
      %s483 = sshll.u32 %s12, 4
      %s484 = int_to_ptr.hbm [resolvable:$true] %s483
      %489 = dma.vmem_to_hbm [thread:$0]  %s482, 256, %s484, [#allocation19], 128, 128, 8
    $region89: #{tpu_custom_call.1} parent=1 // pred_fallthru
      _
    // Predicated region
    $region90: #{tpu_custom_call.1} parent=1 // pred_check
      _
    $region91: #{tpu_custom_call.1} parent=1 // pred_check_branch
      %491 = sbr.rel (0) target = $region93
    $region92: #{tpu_custom_call.1} parent=1 // pred_region
      %493 = vsyncadd [#allocation19], 0
      %s494 = sshll.u32 [#allocation20], 4
      %s495 = int_to_ptr.vmem [resolvable:$true] %s494
      %s496 = sshll.u32 %s13, 4
      %s497 = int_to_ptr.hbm [resolvable:$true] %s496
      %502 = dma.vmem_to_hbm [thread:$0]  %s495, 256, %s497, [#allocation19], 128, 128, 8
    $region93: #{tpu_custom_call.1} parent=1 // pred_fallthru
      _
    // Predicated region
    $region94: #{tpu_custom_call.1} parent=1 // pred_check
      _
    $region95: #{tpu_custom_call.1} parent=1 // pred_check_branch
      %504 = sbr.rel (0) target = $region97
    $region96: #{tpu_custom_call.1} parent=1 // pred_region
      %506 = dma.done [#allocation5], 128
    $region97: #{tpu_custom_call.1} parent=1 // pred_fallthru
      _
    // Predicated region
    $region98: #{tpu_custom_call.1} parent=1 // pred_check
      _
    $region99: #{tpu_custom_call.1} parent=1 // pred_check_branch
      %508 = sbr.rel (0) target = $region101
    $region100: #{tpu_custom_call.1} parent=1 // pred_region
      %510 = dma.done [#allocation19], 256
    $region101: #{tpu_custom_call.1} parent=1 // pred_fallthru
      _
    // Predicated region
    $region102: #{tpu_custom_call.1} parent=1 // pred_check
      _
    $region103: #{tpu_custom_call.1} parent=1 // pred_check_branch
      %512 = sbr.rel (0) target = $region105
    $region104: #{tpu_custom_call.1} parent=1 // pred_region
      %514 = dma.done [#allocation19], 256
    $region105: #{tpu_custom_call.1} parent=1 // pred_fallthru
      _
    %515 = vsyncpa [#allocation4], 1
    %516 = vsyncpa [#allocation7], 1
    %517 = vsyncpa [#allocation10], 1
    %518 = vsyncpa [#allocation13], 1
    %519 = vsyncpa [#allocation16], 1
    %520 = vsyncpa [#allocation5], 1
    %521 = vsyncpa [#allocation19], 1

</llo_original>
